<compile_context>
chip_gen: v7x
topology: tpu7x:2x2x1
jax: 0.10.0
libtpu: 0.0.40
codegen_flags: <defaults>
</compile_context>

<pallas_src>
import functools

import jax
import jax.numpy as jnp
from jax import lax
from jax.experimental import pallas as pl
from jax.experimental.pallas import tpu as pltpu

B = 2          # batch
L0 = 16        # input sequence length (must be divisible by 4)
C_IN = 64      # in_channel of the module
C_MID = 64     # conv_1 output channels (fixed by the module)
CPAD = 128     # lane-padded channel width used inside the kernel
EPS = 1e-5     # BatchNorm1d eps


def _conv_bn_relu(x, w, bias, gamma, beta, length, cin):
    """Fused Conv1d(k=3, s=1, p=1) + BatchNorm1d (training-mode stats) + ReLU.

    x:     (rows, 128) f32 slab, rows ordered batch-major (rows = batch*length),
           real channels in lanes [0, cin).
    w:     bf16 fused weight, (256, 128) if 2*cin <= 128 (tight tap packing)
           else (384, 128) with row blocks [left | center | right].
    bias, gamma, beta: (1, 128) f32 (zero-padded past the real channel count).
    """
    rows = x.shape[0]
    # per-sample position along the sequence (rows are batch-major)
    pos = lax.broadcasted_iota(jnp.int32, (rows, 1), 0) % length
    # left / right neighbours, zero-masked at per-sample sequence boundaries
    x_left = jnp.where(pos >= 1, pltpu.roll(x, shift=1, axis=0), 0.0)
    x_right = jnp.where(pos <= length - 2, pltpu.roll(x, shift=rows - 1, axis=0), 0.0)

    if 2 * cin <= CPAD:
        # Tight packing: real channels sit in lanes [0, cin); lane-roll the
        # center tap up by `cin` lanes and merge with the left tap so the
        # contraction is K=256 (left|center in slab 0, right in slab 1).
        center_hi = pltpu.roll(x, shift=cin, axis=1)     # channels -> lanes [cin, 2cin)
        xcat = jnp.concatenate([x_left + center_hi, x_right], axis=-1)   # (rows, 256)
    else:
        xcat = jnp.concatenate([x_left, x, x_right], axis=-1)            # (rows, 384)

    # bf16 operands, f32 accumulation (MXU native rate on v5e/v6e/v7x).
    out = jnp.dot(xcat.astype(jnp.bfloat16), w,
                  preferred_element_type=jnp.float32) + bias

    # BatchNorm1d training mode: biased batch stats over (batch, length) per
    # channel; two-pass variance for numerical stability.
    mu = jnp.mean(out, axis=0, keepdims=True)
    d = out - mu
    var = jnp.mean(d * d, axis=0, keepdims=True)
    out = d * lax.rsqrt(var + EPS) * gamma + beta
    return jnp.maximum(out, 0.0)                                          # ReLU


def _maxpool2(h, scratch_ref):
    """MaxPool1d(kernel=2, stride=2) along the row (length) axis.

    Store the slab once, then read even / odd rows with stride-2 sublane
    loads and take their max.  L is even per sample, so no pooling pair
    straddles a batch-sample boundary.
    """
    rows = h.shape[0]
    scratch_ref[...] = h
    even = scratch_ref[pl.ds(0, rows // 2, stride=2), :]
    odd = scratch_ref[pl.ds(1, rows // 2, stride=2), :]
    return jnp.maximum(even, odd)


def disc_kernel(length, cin, x_ref, w1_ref, w2_ref, w3_ref, p_ref, out_ref,
                pool1_ref, pool2_ref):
    p = p_ref[...]                                                        # (16, 128) f32
    h = _conv_bn_relu(x_ref[...], w1_ref[...], p[0:1], p[1:2], p[2:3], length, cin)
    h = _maxpool2(h, pool1_ref)                                           # (B*L/2, 128)
    h = _conv_bn_relu(h, w2_ref[...], p[3:4], p[4:5], p[5:6], length // 2, C_MID)
    h = _maxpool2(h, pool2_ref)                                           # (B*L/4, 128)
    h = _conv_bn_relu(h, w3_ref[...], p[6:7], p[7:8], p[8:9], length // 4, CPAD)
    # NOTE: pool_3 exists in __init__ but is not applied in forward().
    out_ref[...] = h                                                      # (B*L/4, 128)


def load_disc_forward_stacked(tars, packed):
    """N stacked independent forward calls.

    tars: (N, B, 64, L) float32 in PyTorch NCW layout.
    Returns (N, B, 128*(L//4)).  Grid over N keeps the fused weights
    VMEM-resident across calls (constant index_map) and pipelines per-call
    input/output DMAs under compute; "parallel" shards calls across v7x's
    two TensorCores.  BN statistics are computed per logical call.
    """
    n, b, c, l = tars.shape
    assert l % 4 == 0 and 0 < c <= CPAD
    # NCW -> (N, B*L, C) rows, zero-pad channels to 128 lanes (inside the jit
    # so XLA fuses this plumbing with the surrounding ops).
    x_rows = jnp.transpose(tars, (0, 1, 3, 2)).reshape(n, b * l, c)
    x_rows = jnp.pad(x_rows, ((0, 0), (0, 0), (0, CPAD - c)))

    w1, w2, w3, pvec = packed["W1"], packed["W2"], packed["W3"], packed["P"]

    out_rows = pl.pallas_call(
        functools.partial(disc_kernel, l, c),
        out_shape=jax.ShapeDtypeStruct((n, b * (l // 4), CPAD), jnp.float32),
        grid=(n,),
        in_specs=[
            pl.BlockSpec((None, b * l, CPAD), lambda i: (i, 0, 0)),
            pl.BlockSpec(w1.shape, lambda i: (0, 0)),   # constant block ->
            pl.BlockSpec(w2.shape, lambda i: (0, 0)),   # weights stay resident
            pl.BlockSpec(w3.shape, lambda i: (0, 0)),   # across grid steps
            pl.BlockSpec(pvec.shape, lambda i: (0, 0)),
        ],
        out_specs=pl.BlockSpec((None, b * (l // 4), CPAD), lambda i: (i, 0, 0)),
        scratch_shapes=[pltpu.VMEM((b * l, CPAD), jnp.float32),
                        pltpu.VMEM((b * l // 2, CPAD), jnp.float32)],
        compiler_params=pltpu.CompilerParams(
            dimension_semantics=("parallel",)),
    )(x_rows, w1, w2, w3, pvec)

    # restore PyTorch Flatten order: (.., L//4, C=128) -> (.., 128*(L//4))
    out = out_rows.reshape(n, b, l // 4, CPAD)
    out = jnp.transpose(out, (0, 1, 3, 2)).reshape(n, b, CPAD * (l // 4))
    return out


def load_disc_forward(tar, packed):
    """Single forward call: tar (B, 64, L) NCW -> (B, 128*(L//4))."""
    return load_disc_forward_stacked(tar[None], packed)[0]


def init_params(key):
    ks = jax.random.split(key, 6)

    def conv_w(k, cin, cout):
        # natural layout (K=3, Cin, Cout); tap 0 is the "left" tap.
        # (a real PyTorch checkpoint weight (Cout, Cin, K) maps here via permute(2,1,0))
        return jax.random.normal(k, (3, cin, cout), jnp.float32) / jnp.sqrt(3.0 * cin)

    p = {}
    p["w1"] = conv_w(ks[0], C_IN, 64)
    p["b1"] = jax.random.normal(ks[1], (64,), jnp.float32) * 0.01
    p["g1"] = jnp.ones((64,), jnp.float32)      # BN weight (default init)
    p["be1"] = jnp.zeros((64,), jnp.float32)    # BN bias   (default init)
    p["w2"] = conv_w(ks[2], 64, 128)
    p["b2"] = jax.random.normal(ks[3], (128,), jnp.float32) * 0.01
    p["g2"] = jnp.ones((128,), jnp.float32)
    p["be2"] = jnp.zeros((128,), jnp.float32)
    p["w3"] = conv_w(ks[4], 128, 128)
    p["b3"] = jax.random.normal(ks[5], (128,), jnp.float32) * 0.01
    p["g3"] = jnp.ones((128,), jnp.float32)
    p["be3"] = jnp.zeros((128,), jnp.float32)
    return p


def pack_params(p):
    """Fuse conv taps into lane-aligned MXU weights (bf16) and pack all nine
    bias/BN vectors into one (16, 128) f32 array.

    Layers with cin <= 64 use the tight K=256 layout matching the kernel's
    lane-roll packing: rows [0:cin]=left, [cin:2cin]=center, [128:128+cin]=right.
    Layers with cin == 128 use the standard K=384 layout [left|center|right].
    """
    def fuse_w(w):
        _, cin, cout = w.shape
        if 2 * cin <= CPAD:
            fused = jnp.zeros((2 * CPAD, CPAD), jnp.float32)
            fused = fused.at[0:cin, :cout].set(w[0])              # left tap
            fused = fused.at[cin:2 * cin, :cout].set(w[1])        # center tap (lane-shifted)
            fused = fused.at[CPAD:CPAD + cin, :cout].set(w[2])    # right tap
        else:
            fused = jnp.zeros((3 * CPAD, CPAD), jnp.float32)
            for t in range(3):
                fused = fused.at[t * CPAD:t * CPAD + cin, :cout].set(w[t])
        return fused.astype(jnp.bfloat16)   # bf16 operands: MXU native, half the DMA

    def pad_vec(v):
        v = v.reshape(-1)
        return jnp.pad(v, (0, CPAD - v.shape[0])).reshape(1, CPAD)

    rows = [pad_vec(p[n]) for n in
            ("b1", "g1", "be1", "b2", "g2", "be2", "b3", "g3", "be3")]
    P = jnp.concatenate(rows + [jnp.zeros((16 - len(rows), CPAD), jnp.float32)], axis=0)
    return {"W1": fuse_w(p["w1"]), "W2": fuse_w(p["w2"]),
            "W3": fuse_w(p["w3"]), "P": P}


if __name__ == "__main__":
    key = jax.random.PRNGKey(0)
    k_in, k_p = jax.random.split(key)
    tar = jax.random.normal(k_in, (B, C_IN, L0), jnp.float32)   # PyTorch NCW input
    packed = pack_params(init_params(k_p))

    fwd = jax.jit(load_disc_forward)
    out = jax.block_until_ready(fwd(tar, packed))
    assert out.shape == (B, CPAD * (L0 // 4)), out.shape
    assert bool(jnp.isfinite(out).all())
    print("KERNEL_OK")
</pallas_src>

<mosaic_0001>
module attributes {stable_mosaic.version = 11 : i64} {
  func.func @disc_kernel(%arg0: i32, %arg1: memref<1x32x128xf32, #tpu.memory_space<vmem>>, %arg2: memref<256x128xbf16, #tpu.memory_space<vmem>>, %arg3: memref<256x128xbf16, #tpu.memory_space<vmem>>, %arg4: memref<384x128xbf16, #tpu.memory_space<vmem>>, %arg5: memref<16x128xf32, #tpu.memory_space<vmem>>, %arg6: memref<1x8x128xf32, #tpu.memory_space<vmem>>, %arg7: memref<32x128xf32, #tpu.memory_space<vmem>>, %arg8: memref<16x128xf32, #tpu.memory_space<vmem>>) attributes {dimension_semantics = [#tpu.dimension_semantics<parallel>], iteration_bounds = array<i64: 1>, scalar_prefetch = 0 : i64, scratch_operands = 2 : i64, tpu.core_type = #tpu.core_type<tc>, window_params = [{transform_indices = @transform_0, window_bounds = array<i64: 1, 32, 128>}, {pipeline_mode = #tpu.pipeline_mode<synchronous>, transform_indices = @transform_1, window_bounds = array<i64: 256, 128>}, {pipeline_mode = #tpu.pipeline_mode<synchronous>, transform_indices = @transform_2, window_bounds = array<i64: 256, 128>}, {pipeline_mode = #tpu.pipeline_mode<synchronous>, transform_indices = @transform_3, window_bounds = array<i64: 384, 128>}, {pipeline_mode = #tpu.pipeline_mode<synchronous>, transform_indices = @transform_4, window_bounds = array<i64: 16, 128>}, {transform_indices = @transform_5, window_bounds = array<i64: 1, 8, 128>}]} {
    %c0 = arith.constant 0 : index
    %c0_0 = arith.constant 0 : index
    %0 = vector.load %arg5[%c0, %c0_0] : memref<16x128xf32, #tpu.memory_space<vmem>>, vector<16x128xf32>
    %c0_1 = arith.constant 0 : index
    %c0_2 = arith.constant 0 : index
    %c0_3 = arith.constant 0 : index
    %1 = vector.load %arg1[%c0_1, %c0_2, %c0_3] : memref<1x32x128xf32, #tpu.memory_space<vmem>>, vector<1x32x128xf32>
    %2 = vector.shape_cast %1 : vector<1x32x128xf32> to vector<32x128xf32>
    %c0_4 = arith.constant 0 : index
    %c0_5 = arith.constant 0 : index
    %3 = vector.load %arg2[%c0_4, %c0_5] : memref<256x128xbf16, #tpu.memory_space<vmem>>, vector<256x128xbf16>
    %4 = vector.extract_strided_slice %0 {offsets = [0, 0], sizes = [1, 128], strides = [1, 1]} : vector<16x128xf32> to vector<1x128xf32>
    %5 = vector.extract_strided_slice %0 {offsets = [1, 0], sizes = [1, 128], strides = [1, 1]} : vector<16x128xf32> to vector<1x128xf32>
    %6 = vector.extract_strided_slice %0 {offsets = [2, 0], sizes = [1, 128], strides = [1, 1]} : vector<16x128xf32> to vector<1x128xf32>
    %7 = tpu.iota {dimensions = array<i32: 0>} : vector<32x1xi32>
    %c16_i32 = arith.constant 16 : i32
    %c0_i32 = arith.constant 0 : i32
    %8 = arith.cmpi eq, %c16_i32, %c0_i32 : i32
    %c1_i32 = arith.constant 1 : i32
    %9 = arith.select %8, %c1_i32, %c16_i32 : i32
    %10 = vector.broadcast %9 : i32 to vector<32x1xi32>
    %11 = arith.remsi %7, %10 : vector<32x1xi32>
    %c0_i32_6 = arith.constant 0 : i32
    %12 = vector.broadcast %c0_i32_6 : i32 to vector<32x1xi32>
    %13 = arith.cmpi ne, %11, %12 : vector<32x1xi32>
    %c0_i32_7 = arith.constant 0 : i32
    %14 = vector.broadcast %c0_i32_7 : i32 to vector<32x1xi32>
    %15 = arith.cmpi slt, %11, %14 : vector<32x1xi32>
    %c0_i32_8 = arith.constant 0 : i32
    %16 = arith.cmpi slt, %9, %c0_i32_8 : i32
    %17 = vector.broadcast %16 : i1 to vector<32x1xi1>
    %18 = vector.broadcast %17 : vector<32x1xi1> to vector<32x1xi1>
    %19 = arith.xori %15, %18 : vector<32x1xi1>
    %20 = arith.andi %19, %13 : vector<32x1xi1>
    %21 = vector.broadcast %9 : i32 to vector<32x1xi32>
    %22 = arith.addi %11, %21 : vector<32x1xi32>
    %23 = arith.select %20, %22, %11 : vector<32x1xi1>, vector<32x1xi32>
    %c1_i32_9 = arith.constant 1 : i32
    %24 = vector.broadcast %c1_i32_9 : i32 to vector<32x1xi32>
    %25 = arith.cmpi sge, %23, %24 : vector<32x1xi32>
    %c1_i32_10 = arith.constant 1 : i32
    %26 = tpu.dynamic_rotate %2 by %c1_i32_10 dim 0 : vector<32x128xf32>, i32 -> vector<32x128xf32>
    %cst = arith.constant 0.000000e+00 : f32
    %27 = vector.shape_cast %25 : vector<32x1xi1> to vector<32x1xi1>
    %28 = vector.broadcast %27 : vector<32x1xi1> to vector<32x128xi1>
    %29 = vector.broadcast %cst : f32 to vector<32x128xf32>
    %30 = arith.select %28, %26, %29 : vector<32x128xi1>, vector<32x128xf32>
    %c14_i32 = arith.constant 14 : i32
    %31 = vector.broadcast %c14_i32 : i32 to vector<32x1xi32>
    %32 = arith.cmpi sle, %23, %31 : vector<32x1xi32>
    %c31_i32 = arith.constant 31 : i32
    %33 = tpu.dynamic_rotate %2 by %c31_i32 dim 0 : vector<32x128xf32>, i32 -> vector<32x128xf32>
    %cst_11 = arith.constant 0.000000e+00 : f32
    %34 = vector.shape_cast %32 : vector<32x1xi1> to vector<32x1xi1>
    %35 = vector.broadcast %34 : vector<32x1xi1> to vector<32x128xi1>
    %36 = vector.broadcast %cst_11 : f32 to vector<32x128xf32>
    %37 = arith.select %35, %33, %36 : vector<32x128xi1>, vector<32x128xf32>
    %c64_i32 = arith.constant 64 : i32
    %38 = tpu.dynamic_rotate %2 by %c64_i32 dim 1 : vector<32x128xf32>, i32 -> vector<32x128xf32>
    %39 = arith.addf %30, %38 : vector<32x128xf32>
    %40 = tpu.concatenate %39, %37 in 1 : vector<32x128xf32>, vector<32x128xf32> -> vector<32x256xf32>
    %41 = arith.truncf %40 : vector<32x256xf32> to vector<32x256xbf16>
    %cst_12 = arith.constant dense<0.000000e+00> : vector<32x128xf32>
    %42 = tpu.matmul %41, %3, %cst_12 {dimension_numbers = #tpu.dot_dimension_numbers<[1], [0], [0], [1], [0, 0, 1, 1], [], []>} : vector<32x256xbf16>, vector<256x128xbf16>, vector<32x128xf32> -> vector<32x128xf32>
    %43 = vector.broadcast %4 : vector<1x128xf32> to vector<32x128xf32>
    %44 = arith.addf %42, %43 : vector<32x128xf32>
    %cst_13 = arith.constant dense<0.000000e+00> : vector<128xf32>
    %45 = vector.multi_reduction <add>, %44, %cst_13 [0] : vector<32x128xf32> to vector<128xf32>
    %46 = vector.shape_cast %45 : vector<128xf32> to vector<1x128xf32>
    %cst_14 = arith.constant 3.200000e+01 : f32
    %47 = vector.broadcast %cst_14 : f32 to vector<1x128xf32>
    %48 = arith.divf %46, %47 : vector<1x128xf32>
    %49 = vector.broadcast %48 : vector<1x128xf32> to vector<32x128xf32>
    %50 = arith.subf %44, %49 : vector<32x128xf32>
    %51 = arith.mulf %50, %50 : vector<32x128xf32>
    %cst_15 = arith.constant dense<0.000000e+00> : vector<128xf32>
    %52 = vector.multi_reduction <add>, %51, %cst_15 [0] : vector<32x128xf32> to vector<128xf32>
    %53 = vector.shape_cast %52 : vector<128xf32> to vector<1x128xf32>
    %cst_16 = arith.constant 3.200000e+01 : f32
    %54 = vector.broadcast %cst_16 : f32 to vector<1x128xf32>
    %55 = arith.divf %53, %54 : vector<1x128xf32>
    %cst_17 = arith.constant 9.99999974E-6 : f32
    %56 = vector.broadcast %cst_17 : f32 to vector<1x128xf32>
    %57 = arith.addf %55, %56 : vector<1x128xf32>
    %58 = math.rsqrt %57 : vector<1x128xf32>
    %59 = vector.broadcast %58 : vector<1x128xf32> to vector<32x128xf32>
    %60 = arith.mulf %50, %59 : vector<32x128xf32>
    %61 = vector.broadcast %5 : vector<1x128xf32> to vector<32x128xf32>
    %62 = arith.mulf %60, %61 : vector<32x128xf32>
    %63 = vector.broadcast %6 : vector<1x128xf32> to vector<32x128xf32>
    %64 = arith.addf %62, %63 : vector<32x128xf32>
    %cst_18 = arith.constant 0.000000e+00 : f32
    %65 = vector.broadcast %cst_18 : f32 to vector<32x128xf32>
    %66 = arith.maximumf %64, %65 : vector<32x128xf32>
    %c0_19 = arith.constant 0 : index
    %c0_20 = arith.constant 0 : index
    %67 = vector.load %arg7[%c0_19, %c0_20] : memref<32x128xf32, #tpu.memory_space<vmem>>, vector<32x128xf32>
    tpu.vector_store %arg7[%c0_19, %c0_20], %66 {strides = array<i32>} : memref<32x128xf32, #tpu.memory_space<vmem>>, vector<32x128xf32>,
    %c0_21 = arith.constant 0 : index
    %c0_22 = arith.constant 0 : index
    %68 = tpu.strided_load %arg7[%c0_21, %c0_22] {strides = array<i32: 2, 1>} : memref<32x128xf32, #tpu.memory_space<vmem>>, vector<16x128xf32>
    %c1 = arith.constant 1 : index
    %c0_23 = arith.constant 0 : index
    %69 = tpu.strided_load %arg7[%c1, %c0_23] {strides = array<i32: 2, 1>} : memref<32x128xf32, #tpu.memory_space<vmem>>, vector<16x128xf32>
    %70 = arith.maximumf %68, %69 : vector<16x128xf32>
    %c0_24 = arith.constant 0 : index
    %c0_25 = arith.constant 0 : index
    %71 = vector.load %arg3[%c0_24, %c0_25] : memref<256x128xbf16, #tpu.memory_space<vmem>>, vector<256x128xbf16>
    %72 = vector.extract_strided_slice %0 {offsets = [3, 0], sizes = [1, 128], strides = [1, 1]} : vector<16x128xf32> to vector<1x128xf32>
    %73 = vector.extract_strided_slice %0 {offsets = [4, 0], sizes = [1, 128], strides = [1, 1]} : vector<16x128xf32> to vector<1x128xf32>
    %74 = vector.extract_strided_slice %0 {offsets = [5, 0], sizes = [1, 128], strides = [1, 1]} : vector<16x128xf32> to vector<1x128xf32>
    %75 = tpu.iota {dimensions = array<i32: 0>} : vector<16x1xi32>
    %c8_i32 = arith.constant 8 : i32
    %c0_i32_26 = arith.constant 0 : i32
    %76 = arith.cmpi eq, %c8_i32, %c0_i32_26 : i32
    %c1_i32_27 = arith.constant 1 : i32
    %77 = arith.select %76, %c1_i32_27, %c8_i32 : i32
    %78 = vector.broadcast %77 : i32 to vector<16x1xi32>
    %79 = arith.remsi %75, %78 : vector<16x1xi32>
    %c0_i32_28 = arith.constant 0 : i32
    %80 = vector.broadcast %c0_i32_28 : i32 to vector<16x1xi32>
    %81 = arith.cmpi ne, %79, %80 : vector<16x1xi32>
    %c0_i32_29 = arith.constant 0 : i32
    %82 = vector.broadcast %c0_i32_29 : i32 to vector<16x1xi32>
    %83 = arith.cmpi slt, %79, %82 : vector<16x1xi32>
    %c0_i32_30 = arith.constant 0 : i32
    %84 = arith.cmpi slt, %77, %c0_i32_30 : i32
    %85 = vector.broadcast %84 : i1 to vector<16x1xi1>
    %86 = vector.broadcast %85 : vector<16x1xi1> to vector<16x1xi1>
    %87 = arith.xori %83, %86 : vector<16x1xi1>
    %88 = arith.andi %87, %81 : vector<16x1xi1>
    %89 = vector.broadcast %77 : i32 to vector<16x1xi32>
    %90 = arith.addi %79, %89 : vector<16x1xi32>
    %91 = arith.select %88, %90, %79 : vector<16x1xi1>, vector<16x1xi32>
    %c1_i32_31 = arith.constant 1 : i32
    %92 = vector.broadcast %c1_i32_31 : i32 to vector<16x1xi32>
    %93 = arith.cmpi sge, %91, %92 : vector<16x1xi32>
    %c1_i32_32 = arith.constant 1 : i32
    %94 = tpu.dynamic_rotate %70 by %c1_i32_32 dim 0 : vector<16x128xf32>, i32 -> vector<16x128xf32>
    %cst_33 = arith.constant 0.000000e+00 : f32
    %95 = vector.shape_cast %93 : vector<16x1xi1> to vector<16x1xi1>
    %96 = vector.broadcast %95 : vector<16x1xi1> to vector<16x128xi1>
    %97 = vector.broadcast %cst_33 : f32 to vector<16x128xf32>
    %98 = arith.select %96, %94, %97 : vector<16x128xi1>, vector<16x128xf32>
    %c6_i32 = arith.constant 6 : i32
    %99 = vector.broadcast %c6_i32 : i32 to vector<16x1xi32>
    %100 = arith.cmpi sle, %91, %99 : vector<16x1xi32>
    %c15_i32 = arith.constant 15 : i32
    %101 = tpu.dynamic_rotate %70 by %c15_i32 dim 0 : vector<16x128xf32>, i32 -> vector<16x128xf32>
    %cst_34 = arith.constant 0.000000e+00 : f32
    %102 = vector.shape_cast %100 : vector<16x1xi1> to vector<16x1xi1>
    %103 = vector.broadcast %102 : vector<16x1xi1> to vector<16x128xi1>
    %104 = vector.broadcast %cst_34 : f32 to vector<16x128xf32>
    %105 = arith.select %103, %101, %104 : vector<16x128xi1>, vector<16x128xf32>
    %c64_i32_35 = arith.constant 64 : i32
    %106 = tpu.dynamic_rotate %70 by %c64_i32_35 dim 1 : vector<16x128xf32>, i32 -> vector<16x128xf32>
    %107 = arith.addf %98, %106 : vector<16x128xf32>
    %108 = tpu.concatenate %107, %105 in 1 : vector<16x128xf32>, vector<16x128xf32> -> vector<16x256xf32>
    %109 = arith.truncf %108 : vector<16x256xf32> to vector<16x256xbf16>
    %cst_36 = arith.constant dense<0.000000e+00> : vector<16x128xf32>
    %110 = tpu.matmul %109, %71, %cst_36 {dimension_numbers = #tpu.dot_dimension_numbers<[1], [0], [0], [1], [0, 0, 1, 1], [], []>} : vector<16x256xbf16>, vector<256x128xbf16>, vector<16x128xf32> -> vector<16x128xf32>
    %111 = vector.broadcast %72 : vector<1x128xf32> to vector<16x128xf32>
    %112 = arith.addf %110, %111 : vector<16x128xf32>
    %cst_37 = arith.constant dense<0.000000e+00> : vector<128xf32>
    %113 = vector.multi_reduction <add>, %112, %cst_37 [0] : vector<16x128xf32> to vector<128xf32>
    %114 = vector.shape_cast %113 : vector<128xf32> to vector<1x128xf32>
    %cst_38 = arith.constant 1.600000e+01 : f32
    %115 = vector.broadcast %cst_38 : f32 to vector<1x128xf32>
    %116 = arith.divf %114, %115 : vector<1x128xf32>
    %117 = vector.broadcast %116 : vector<1x128xf32> to vector<16x128xf32>
    %118 = arith.subf %112, %117 : vector<16x128xf32>
    %119 = arith.mulf %118, %118 : vector<16x128xf32>
    %cst_39 = arith.constant dense<0.000000e+00> : vector<128xf32>
    %120 = vector.multi_reduction <add>, %119, %cst_39 [0] : vector<16x128xf32> to vector<128xf32>
    %121 = vector.shape_cast %120 : vector<128xf32> to vector<1x128xf32>
    %cst_40 = arith.constant 1.600000e+01 : f32
    %122 = vector.broadcast %cst_40 : f32 to vector<1x128xf32>
    %123 = arith.divf %121, %122 : vector<1x128xf32>
    %cst_41 = arith.constant 9.99999974E-6 : f32
    %124 = vector.broadcast %cst_41 : f32 to vector<1x128xf32>
    %125 = arith.addf %123, %124 : vector<1x128xf32>
    %126 = math.rsqrt %125 : vector<1x128xf32>
    %127 = vector.broadcast %126 : vector<1x128xf32> to vector<16x128xf32>
    %128 = arith.mulf %118, %127 : vector<16x128xf32>
    %129 = vector.broadcast %73 : vector<1x128xf32> to vector<16x128xf32>
    %130 = arith.mulf %128, %129 : vector<16x128xf32>
    %131 = vector.broadcast %74 : vector<1x128xf32> to vector<16x128xf32>
    %132 = arith.addf %130, %131 : vector<16x128xf32>
    %cst_42 = arith.constant 0.000000e+00 : f32
    %133 = vector.broadcast %cst_42 : f32 to vector<16x128xf32>
    %134 = arith.maximumf %132, %133 : vector<16x128xf32>
    %c0_43 = arith.constant 0 : index
    %c0_44 = arith.constant 0 : index
    %135 = vector.load %arg8[%c0_43, %c0_44] : memref<16x128xf32, #tpu.memory_space<vmem>>, vector<16x128xf32>
    tpu.vector_store %arg8[%c0_43, %c0_44], %134 {strides = array<i32>} : memref<16x128xf32, #tpu.memory_space<vmem>>, vector<16x128xf32>,
    %c0_45 = arith.constant 0 : index
    %c0_46 = arith.constant 0 : index
    %136 = tpu.strided_load %arg8[%c0_45, %c0_46] {strides = array<i32: 2, 1>} : memref<16x128xf32, #tpu.memory_space<vmem>>, vector<8x128xf32>
    %c1_47 = arith.constant 1 : index
    %c0_48 = arith.constant 0 : index
    %137 = tpu.strided_load %arg8[%c1_47, %c0_48] {strides = array<i32: 2, 1>} : memref<16x128xf32, #tpu.memory_space<vmem>>, vector<8x128xf32>
    %138 = arith.maximumf %136, %137 : vector<8x128xf32>
    %c0_49 = arith.constant 0 : index
    %c0_50 = arith.constant 0 : index
    %139 = vector.load %arg4[%c0_49, %c0_50] : memref<384x128xbf16, #tpu.memory_space<vmem>>, vector<384x128xbf16>
    %140 = vector.extract_strided_slice %0 {offsets = [6, 0], sizes = [1, 128], strides = [1, 1]} : vector<16x128xf32> to vector<1x128xf32>
    %141 = vector.extract_strided_slice %0 {offsets = [7, 0], sizes = [1, 128], strides = [1, 1]} : vector<16x128xf32> to vector<1x128xf32>
    %142 = vector.extract_strided_slice %0 {offsets = [8, 0], sizes = [1, 128], strides = [1, 1]} : vector<16x128xf32> to vector<1x128xf32>
    %143 = tpu.iota {dimensions = array<i32: 0>} : vector<8x1xi32>
    %c4_i32 = arith.constant 4 : i32
    %c0_i32_51 = arith.constant 0 : i32
    %144 = arith.cmpi eq, %c4_i32, %c0_i32_51 : i32
    %c1_i32_52 = arith.constant 1 : i32
    %145 = arith.select %144, %c1_i32_52, %c4_i32 : i32
    %146 = vector.broadcast %145 : i32 to vector<8x1xi32>
    %147 = arith.remsi %143, %146 : vector<8x1xi32>
    %c0_i32_53 = arith.constant 0 : i32
    %148 = vector.broadcast %c0_i32_53 : i32 to vector<8x1xi32>
    %149 = arith.cmpi ne, %147, %148 : vector<8x1xi32>
    %c0_i32_54 = arith.constant 0 : i32
    %150 = vector.broadcast %c0_i32_54 : i32 to vector<8x1xi32>
    %151 = arith.cmpi slt, %147, %150 : vector<8x1xi32>
    %c0_i32_55 = arith.constant 0 : i32
    %152 = arith.cmpi slt, %145, %c0_i32_55 : i32
    %153 = vector.broadcast %152 : i1 to vector<8x1xi1>
    %154 = vector.broadcast %153 : vector<8x1xi1> to vector<8x1xi1>
    %155 = arith.xori %151, %154 : vector<8x1xi1>
    %156 = arith.andi %155, %149 : vector<8x1xi1>
    %157 = vector.broadcast %145 : i32 to vector<8x1xi32>
    %158 = arith.addi %147, %157 : vector<8x1xi32>
    %159 = arith.select %156, %158, %147 : vector<8x1xi1>, vector<8x1xi32>
    %c1_i32_56 = arith.constant 1 : i32
    %160 = vector.broadcast %c1_i32_56 : i32 to vector<8x1xi32>
    %161 = arith.cmpi sge, %159, %160 : vector<8x1xi32>
    %c1_i32_57 = arith.constant 1 : i32
    %162 = tpu.dynamic_rotate %138 by %c1_i32_57 dim 0 : vector<8x128xf32>, i32 -> vector<8x128xf32>
    %cst_58 = arith.constant 0.000000e+00 : f32
    %163 = vector.shape_cast %161 : vector<8x1xi1> to vector<8x1xi1>
    %164 = vector.broadcast %163 : vector<8x1xi1> to vector<8x128xi1>
    %165 = vector.broadcast %cst_58 : f32 to vector<8x128xf32>
    %166 = arith.select %164, %162, %165 : vector<8x128xi1>, vector<8x128xf32>
    %c2_i32 = arith.constant 2 : i32
    %167 = vector.broadcast %c2_i32 : i32 to vector<8x1xi32>
    %168 = arith.cmpi sle, %159, %167 : vector<8x1xi32>
    %c7_i32 = arith.constant 7 : i32
    %169 = tpu.dynamic_rotate %138 by %c7_i32 dim 0 : vector<8x128xf32>, i32 -> vector<8x128xf32>
    %cst_59 = arith.constant 0.000000e+00 : f32
    %170 = vector.shape_cast %168 : vector<8x1xi1> to vector<8x1xi1>
    %171 = vector.broadcast %170 : vector<8x1xi1> to vector<8x128xi1>
    %172 = vector.broadcast %cst_59 : f32 to vector<8x128xf32>
    %173 = arith.select %171, %169, %172 : vector<8x128xi1>, vector<8x128xf32>
    %174 = tpu.concatenate %166, %138, %173 in 1 : vector<8x128xf32>, vector<8x128xf32>, vector<8x128xf32> -> vector<8x384xf32>
    %175 = arith.truncf %174 : vector<8x384xf32> to vector<8x384xbf16>
    %cst_60 = arith.constant dense<0.000000e+00> : vector<8x128xf32>
    %176 = tpu.matmul %175, %139, %cst_60 {dimension_numbers = #tpu.dot_dimension_numbers<[1], [0], [0], [1], [0, 0, 1, 1], [], []>} : vector<8x384xbf16>, vector<384x128xbf16>, vector<8x128xf32> -> vector<8x128xf32>
    %177 = vector.broadcast %140 : vector<1x128xf32> to vector<8x128xf32>
    %178 = arith.addf %176, %177 : vector<8x128xf32>
    %cst_61 = arith.constant dense<0.000000e+00> : vector<128xf32>
    %179 = vector.multi_reduction <add>, %178, %cst_61 [0] : vector<8x128xf32> to vector<128xf32>
    %180 = vector.shape_cast %179 : vector<128xf32> to vector<1x128xf32>
    %cst_62 = arith.constant 8.000000e+00 : f32
    %181 = vector.broadcast %cst_62 : f32 to vector<1x128xf32>
    %182 = arith.divf %180, %181 : vector<1x128xf32>
    %183 = vector.broadcast %182 : vector<1x128xf32> to vector<8x128xf32>
    %184 = arith.subf %178, %183 : vector<8x128xf32>
    %185 = arith.mulf %184, %184 : vector<8x128xf32>
    %cst_63 = arith.constant dense<0.000000e+00> : vector<128xf32>
    %186 = vector.multi_reduction <add>, %185, %cst_63 [0] : vector<8x128xf32> to vector<128xf32>
    %187 = vector.shape_cast %186 : vector<128xf32> to vector<1x128xf32>
    %cst_64 = arith.constant 8.000000e+00 : f32
    %188 = vector.broadcast %cst_64 : f32 to vector<1x128xf32>
    %189 = arith.divf %187, %188 : vector<1x128xf32>
    %cst_65 = arith.constant 9.99999974E-6 : f32
    %190 = vector.broadcast %cst_65 : f32 to vector<1x128xf32>
    %191 = arith.addf %189, %190 : vector<1x128xf32>
    %192 = math.rsqrt %191 : vector<1x128xf32>
    %193 = vector.broadcast %192 : vector<1x128xf32> to vector<8x128xf32>
    %194 = arith.mulf %184, %193 : vector<8x128xf32>
    %195 = vector.broadcast %141 : vector<1x128xf32> to vector<8x128xf32>
    %196 = arith.mulf %194, %195 : vector<8x128xf32>
    %197 = vector.broadcast %142 : vector<1x128xf32> to vector<8x128xf32>
    %198 = arith.addf %196, %197 : vector<8x128xf32>
    %cst_66 = arith.constant 0.000000e+00 : f32
    %199 = vector.broadcast %cst_66 : f32 to vector<8x128xf32>
    %200 = arith.maximumf %198, %199 : vector<8x128xf32>
    %c0_67 = arith.constant 0 : index
    %c0_68 = arith.constant 0 : index
    %c0_69 = arith.constant 0 : index
    %201 = vector.load %arg6[%c0_67, %c0_68, %c0_69] : memref<1x8x128xf32, #tpu.memory_space<vmem>>, vector<1x8x128xf32>
    %202 = vector.shape_cast %201 : vector<1x8x128xf32> to vector<8x128xf32>
    %203 = vector.shape_cast %200 : vector<8x128xf32> to vector<1x8x128xf32>
    tpu.vector_store %arg6[%c0_67, %c0_68, %c0_69], %203 {strides = array<i32>} : memref<1x8x128xf32, #tpu.memory_space<vmem>>, vector<1x8x128xf32>,
    return
  }
  func.func @transform_0(%arg0: i32) -> (i32, i32, i32) {
    %c0_i32 = arith.constant 0 : i32
    %c0_i32_0 = arith.constant 0 : i32
    %c0_i32_1 = arith.constant 0 : i32
    return %arg0, %c0_i32, %c0_i32_0 : i32, i32, i32
  }
  func.func @transform_1(%arg0: i32) -> (i32, i32) {
    %c0_i32 = arith.constant 0 : i32
    %c0_i32_0 = arith.constant 0 : i32
    %c0_i32_1 = arith.constant 0 : i32
    return %c0_i32, %c0_i32_0 : i32, i32
  }
  func.func @transform_2(%arg0: i32) -> (i32, i32) {
    %c0_i32 = arith.constant 0 : i32
    %c0_i32_0 = arith.constant 0 : i32
    %c0_i32_1 = arith.constant 0 : i32
    return %c0_i32, %c0_i32_0 : i32, i32
  }
  func.func @transform_3(%arg0: i32) -> (i32, i32) {
    %c0_i32 = arith.constant 0 : i32
    %c0_i32_0 = arith.constant 0 : i32
    %c0_i32_1 = arith.constant 0 : i32
    return %c0_i32, %c0_i32_0 : i32, i32
  }
  func.func @transform_4(%arg0: i32) -> (i32, i32) {
    %c0_i32 = arith.constant 0 : i32
    %c0_i32_0 = arith.constant 0 : i32
    %c0_i32_1 = arith.constant 0 : i32
    return %c0_i32, %c0_i32_0 : i32, i32
  }
  func.func @transform_5(%arg0: i32) -> (i32, i32, i32) {
    %c0_i32 = arith.constant 0 : i32
    %c0_i32_0 = arith.constant 0 : i32
    %c0_i32_1 = arith.constant 0 : i32
    return %arg0, %c0_i32, %c0_i32_0 : i32, i32, i32
  }
}

</mosaic_0001>

<llo_original>
// kernel: load_disc_forward.1
$region0: #{load_disc_forward.1}
  #allocation0 [shape = 'u32[]', space=smem, size = 0x4, offset = 0x4, fixed_abs, tag = 'smem constant byte address 0x4 - core index']
  #allocation1 [shape = 'u32[144,128]{1,0:T(1,128)}', space=vmem, size = 0x12000, scoped, tag = 'internal scratch']
  #allocation2 [shape = 'f32[32,128]{1,0:T(8,128)}', space=vmem, size = 0x4000, scoped, tag = 'scratch operand']
  #allocation3 [shape = 'f32[16,128]{1,0:T(8,128)}', space=vmem, size = 0x2000, scoped, tag = 'scratch operand']
  %s0 = inlined_call_operand.vmem [shape: f32[1,32,128], index: 0, kind: input, shape index: {}]
  %s1 = inlined_call_operand.hbm [shape: bf16[256,128], index: 1, kind: input, shape index: {}]
  %s2 = inlined_call_operand.hbm [shape: bf16[256,128], index: 2, kind: input, shape index: {}]
  %s3 = inlined_call_operand.hbm [shape: bf16[384,128], index: 3, kind: input, shape index: {}]
  %s4 = inlined_call_operand.vmem [shape: f32[16,128], index: 4, kind: input, shape index: {}]
  %s5 = inlined_call_operand.vmem [shape: f32[1,8,128], index: 5, kind: output, shape index: {}]
  %s6 = sld [smem:[#allocation0]]
  $region42: #{load_disc_forward.1} parent=0
    _
  %s8 = ssub.s32 1, %s6
  %s9 = scalar_select 0, %s8, %s6
  $region1: #{load_disc_forward.1} parent=0
    #allocation4 [shape = 'u8[65536]{0}', space=vmem, size = 0x10000, scoped, tag = 'input window, operand 1, single buffered']
    #allocation5 [shape = 's32[1]{0}', space=sflag, size = 0x4, scoped, tag = 'scoped memory for load_disc_forward.1']
    #allocation6 [shape = 'u8[65536]{0}', space=vmem, size = 0x10000, scoped, tag = 'input window, operand 2, single buffered']
    #allocation7 [shape = 's32[1]{0}', space=sflag, size = 0x4, scoped, tag = 'scoped memory for load_disc_forward.1']
    #allocation8 [shape = 'u8[98304]{0}', space=vmem, size = 0x18000, scoped, tag = 'input window, operand 3, single buffered']
    %10 = vsyncpa [#allocation5], 0
    %11 = vsyncpa [#allocation7], 0
    // Predicated region
    $region2: #{load_disc_forward.1} parent=1 // pred_check
      _
    $region3: #{load_disc_forward.1} parent=1 // pred_check_branch
      %13 = sbr.rel (0) target = $region5
    $region4: #{load_disc_forward.1} parent=1 // pred_region
      _
    $region5: #{load_disc_forward.1} parent=1 // pred_fallthru
      _
    // Predicated region
    $region6: #{load_disc_forward.1} parent=1 // pred_check
      _
    $region7: #{load_disc_forward.1} parent=1 // pred_check_branch
      %15 = sbr.rel (0) target = $region9
    $region8: #{load_disc_forward.1} parent=1 // pred_region
      %s17 = ssub.s32 2048, 2048
      %18 = vsyncadd [#allocation5], %s17
      %s19 = sshll.u32 [#allocation4], 4
      %s20 = int_to_ptr.vmem [resolvable:$true] %s19
      %25 = dma.hbm_to_vmem [thread:$0]  %s1, 2048, %s20, [#allocation5], 64, 64, 4
    $region9: #{load_disc_forward.1} parent=1 // pred_fallthru
      _
    // Predicated region
    $region10: #{load_disc_forward.1} parent=1 // pred_check
      _
    $region11: #{load_disc_forward.1} parent=1 // pred_check_branch
      %27 = sbr.rel (0) target = $region13
    $region12: #{load_disc_forward.1} parent=1 // pred_region
      %s29 = ssub.s32 2048, 2048
      %30 = vsyncadd [#allocation7], %s29
      %s31 = sshll.u32 [#allocation6], 4
      %s32 = int_to_ptr.vmem [resolvable:$true] %s31
      %37 = dma.hbm_to_vmem [thread:$0]  %s2, 2048, %s32, [#allocation7], 64, 64, 4
    $region13: #{load_disc_forward.1} parent=1 // pred_fallthru
      _
    // Predicated region
    $region14: #{load_disc_forward.1} parent=1 // pred_check
      _
    $region15: #{load_disc_forward.1} parent=1 // pred_check_branch
      %39 = sbr.rel (0) target = $region17
    $region16: #{load_disc_forward.1} parent=1 // pred_region
      %s41 = ssub.s32 3072, 3072
      %42 = vsyncadd [#allocation7], %s41
      %s43 = sshll.u32 [#allocation8], 4
      %s44 = int_to_ptr.vmem [resolvable:$true] %s43
      %49 = dma.hbm_to_vmem [thread:$0]  %s3, 3072, %s44, [#allocation7], 64, 64, 4
    $region17: #{load_disc_forward.1} parent=1 // pred_fallthru
      _
    // Predicated region
    $region18: #{load_disc_forward.1} parent=1 // pred_check
      _
    $region19: #{load_disc_forward.1} parent=1 // pred_check_branch
      %51 = sbr.rel (0) target = $region21
    $region20: #{load_disc_forward.1} parent=1 // pred_region
      _
    $region21: #{load_disc_forward.1} parent=1 // pred_fallthru
      _
    // Predicated region
    $region22: #{load_disc_forward.1} parent=1 // pred_check
      _
    $region23: #{load_disc_forward.1} parent=1 // pred_check_branch
      %53 = sbr.rel (0) target = $region25
    $region24: #{load_disc_forward.1} parent=1 // pred_region
      %54 = dma.done [#allocation5], 2048
    $region25: #{load_disc_forward.1} parent=1 // pred_fallthru
      _
    // Predicated region
    $region26: #{load_disc_forward.1} parent=1 // pred_check
      _
    $region27: #{load_disc_forward.1} parent=1 // pred_check_branch
      %56 = sbr.rel (0) target = $region29
    $region28: #{load_disc_forward.1} parent=1 // pred_region
      %57 = dma.done [#allocation7], 2048
    $region29: #{load_disc_forward.1} parent=1 // pred_fallthru
      _
    // Predicated region
    $region30: #{load_disc_forward.1} parent=1 // pred_check
      _
    $region31: #{load_disc_forward.1} parent=1 // pred_check_branch
      %59 = sbr.rel (0) target = $region33
    $region32: #{load_disc_forward.1} parent=1 // pred_region
      %60 = dma.done [#allocation7], 3072
    $region33: #{load_disc_forward.1} parent=1 // pred_fallthru
      _
    %v62 = vld [vmem:[%s4] sm:$0xff]
    %v63 = vld [vmem:[%s4 + $0x8] sm:$0xff]
    %v64 = vld [vmem:[%s0] sm:$0xff]
    %v65 = vld [vmem:[%s0 + $0x8] sm:$0xff]
    %v66 = vld [vmem:[%s0 + $0x10] sm:$0xff]
    %v67 = vld [vmem:[%s0 + $0x18] sm:$0xff]
    %v68 = vld [vmem:[#allocation4] sm:$0xf]
    %v69 = vld [vmem:[#allocation4 + $0x4] sm:$0xf]
    %v70 = vld [vmem:[#allocation4 + $0x8] sm:$0xf]
    %v71 = vld [vmem:[#allocation4 + $0xc] sm:$0xf]
    %v72 = vld [vmem:[#allocation4 + $0x10] sm:$0xf]
    %v73 = vld [vmem:[#allocation4 + $0x14] sm:$0xf]
    %v74 = vld [vmem:[#allocation4 + $0x18] sm:$0xf]
    %v75 = vld [vmem:[#allocation4 + $0x1c] sm:$0xf]
    %v76 = vld [vmem:[#allocation4 + $0x20] sm:$0xf]
    %v77 = vld [vmem:[#allocation4 + $0x24] sm:$0xf]
    %v78 = vld [vmem:[#allocation4 + $0x28] sm:$0xf]
    %v79 = vld [vmem:[#allocation4 + $0x2c] sm:$0xf]
    %v80 = vld [vmem:[#allocation4 + $0x30] sm:$0xf]
    %v81 = vld [vmem:[#allocation4 + $0x34] sm:$0xf]
    %v82 = vld [vmem:[#allocation4 + $0x38] sm:$0xf]
    %v83 = vld [vmem:[#allocation4 + $0x3c] sm:$0xf]
    %v84 = vld [vmem:[#allocation4 + $0x40] sm:$0xf]
    %v85 = vld [vmem:[#allocation4 + $0x44] sm:$0xf]
    %v86 = vld [vmem:[#allocation4 + $0x48] sm:$0xf]
    %v87 = vld [vmem:[#allocation4 + $0x4c] sm:$0xf]
    %v88 = vld [vmem:[#allocation4 + $0x50] sm:$0xf]
    %v89 = vld [vmem:[#allocation4 + $0x54] sm:$0xf]
    %v90 = vld [vmem:[#allocation4 + $0x58] sm:$0xf]
    %v91 = vld [vmem:[#allocation4 + $0x5c] sm:$0xf]
    %v92 = vld [vmem:[#allocation4 + $0x60] sm:$0xf]
    %v93 = vld [vmem:[#allocation4 + $0x64] sm:$0xf]
    %v94 = vld [vmem:[#allocation4 + $0x68] sm:$0xf]
    %v95 = vld [vmem:[#allocation4 + $0x6c] sm:$0xf]
    %v96 = vld [vmem:[#allocation4 + $0x70] sm:$0xf]
    %v97 = vld [vmem:[#allocation4 + $0x74] sm:$0xf]
    %v98 = vld [vmem:[#allocation4 + $0x78] sm:$0xf]
    %v99 = vld [vmem:[#allocation4 + $0x7c] sm:$0xf]
    %v100 = vlaneseq
    %v101 = vshrl.u32 %v100, 7
    %v102 = vadd.s32 %v101, 8
    %v103 = vadd.s32 %v101, 16
    %v104 = vadd.s32 %v101, 24
    %vm105 = vcmp.lt.s32.totalorder %v101, 0
    %v106 = vsub.s32 0, %v101
    %v107 = vsel %vm105, %v106, %v101
    %v108 = vshrl.u32 %v107, 4
    %v109 = vand.u32 %v107, 15
    %v110 = vsub.s32 0, %v109
    %v111 = vsel %vm105, %v110, %v109
    %vm112 = vcmp.lt.s32.totalorder %v102, 0
    %v113 = vsub.s32 0, %v102
    %v114 = vsel %vm112, %v113, %v102
    %v115 = vshrl.u32 %v114, 4
    %v116 = vand.u32 %v114, 15
    %v117 = vsub.s32 0, %v116
    %v118 = vsel %vm112, %v117, %v116
    %vm119 = vcmp.lt.s32.totalorder %v103, 0
    %v120 = vsub.s32 0, %v103
    %v121 = vsel %vm119, %v120, %v103
    %v122 = vshrl.u32 %v121, 4
    %v123 = vand.u32 %v121, 15
    %v124 = vsub.s32 0, %v123
    %v125 = vsel %vm119, %v124, %v123
    %vm126 = vcmp.lt.s32.totalorder %v104, 0
    %v127 = vsub.s32 0, %v104
    %v128 = vsel %vm126, %v127, %v104
    %v129 = vshrl.u32 %v128, 4
    %v130 = vand.u32 %v128, 15
    %v131 = vsub.s32 0, %v130
    %v132 = vsel %vm126, %v131, %v130
    %vm133 = vcmp.ne.s32.totalorder %v111, 0
    %vm134 = vcmp.ne.s32.totalorder %v118, 0
    %vm135 = vcmp.ne.s32.totalorder %v125, 0
    %vm136 = vcmp.ne.s32.totalorder %v132, 0
    %vm137 = vcmp.lt.s32.totalorder %v111, 0
    %vm138 = vcmp.lt.s32.totalorder %v118, 0
    %vm139 = vcmp.lt.s32.totalorder %v125, 0
    %vm140 = vcmp.lt.s32.totalorder %v132, 0
    %vm141 = vmand %vm137, %vm133
    %vm142 = vmand %vm138, %vm134
    %vm143 = vmand %vm139, %vm135
    %vm144 = vmand %vm140, %vm136
    %v145 = vadd.s32 %v111, 16
    %v146 = vadd.s32 %v118, 16
    %v147 = vadd.s32 %v125, 16
    %v148 = vadd.s32 %v132, 16
    %v149 = vsel %vm141, %v145, %v111
    %v150 = vsel %vm142, %v146, %v118
    %v151 = vsel %vm143, %v147, %v125
    %v152 = vsel %vm144, %v148, %v132
    %vm153 = vcmp.ge.s32.totalorder %v149, 1
    %vm154 = vcmp.ge.s32.totalorder %v150, 1
    %vm155 = vcmp.ge.s32.totalorder %v151, 1
    %vm156 = vcmp.ge.s32.totalorder %v152, 1
    %v157 = vrot.slane %v64, 7
    %v158 = vrot.slane %v65, 7
    %v159 = vrot.slane %v66, 7
    %v160 = vrot.slane %v67, 7
    %vm161 = vcmp.lt.s32.totalorder %v101, 1
    %v162 = vsel %vm161, %v159, %v160
    %v163 = vsel %vm161, %v158, %v159
    %v164 = vsel %vm161, %v157, %v158
    %v165 = vsel %vm161, %v160, %v157
    %v166 = vsel %vm153, 1, 0
    %v167 = vsel %vm154, 1, 0
    %v168 = vsel %vm155, 1, 0
    %v169 = vsel %vm156, 1, 0
    %vm170 = vcmp.eq.s32.totalorder %v166, 1
    %vm171 = vcmp.eq.s32.totalorder %v167, 1
    %vm172 = vcmp.eq.s32.totalorder %v168, 1
    %vm173 = vcmp.eq.s32.totalorder %v169, 1
    %v174 = vsel %vm170, %v165, 0.0
    %v175 = vsel %vm171, %v164, 0.0
    %v176 = vsel %vm172, %v163, 0.0
    %v177 = vsel %vm173, %v162, 0.0
    %vm178 = vcmp.le.s32.totalorder %v149, 14
    %vm179 = vcmp.le.s32.totalorder %v150, 14
    %vm180 = vcmp.le.s32.totalorder %v151, 14
    %vm181 = vcmp.le.s32.totalorder %v152, 14
    %v182 = vrot.slane %v64, 1
    %v183 = vrot.slane %v65, 1
    %v184 = vrot.slane %v66, 1
    %v185 = vrot.slane %v67, 1
    %vm186 = vcmp.lt.s32.totalorder %v101, 7
    %v187 = vsel %vm186, %v184, %v185
    %v188 = vsel %vm186, %v183, %v184
    %v189 = vsel %vm186, %v182, %v183
    %v190 = vsel %vm186, %v185, %v182
    %v191 = vsel %vm178, 1, 0
    %v192 = vsel %vm179, 1, 0
    %v193 = vsel %vm180, 1, 0
    %v194 = vsel %vm181, 1, 0
    %vm195 = vcmp.eq.s32.totalorder %v191, 1
    %vm196 = vcmp.eq.s32.totalorder %v192, 1
    %vm197 = vcmp.eq.s32.totalorder %v193, 1
    %vm198 = vcmp.eq.s32.totalorder %v194, 1
    %v199 = vsel %vm195, %v189, 0.0
    %v200 = vsel %vm196, %v188, 0.0
    %v201 = vsel %vm197, %v187, 0.0
    %v202 = vsel %vm198, %v190, 0.0
    %203 = vrot.lane.b32.xlu0 %v64, 64
    %v204 = vpop.permute.xlu0 %203
    %205 = vrot.lane.b32.xlu0 %v65, 64
    %v206 = vpop.permute.xlu0 %205
    %207 = vrot.lane.b32.xlu0 %v66, 64
    %v208 = vpop.permute.xlu0 %207
    %209 = vrot.lane.b32.xlu0 %v67, 64
    %v210 = vpop.permute.xlu0 %209
    %v211 = vadd.f32 %v174, %v204
    %v212 = vadd.f32 %v175, %v206
    %v213 = vadd.f32 %v176, %v208
    %v214 = vadd.f32 %v177, %v210
    %v215 = vpack.c.bf16 %v212, %v211
    %v216 = vpack.c.bf16 %v200, %v199
    %v217 = vpack.c.bf16 %v214, %v213
    %v218 = vpack.c.bf16 %v202, %v201
    %v219 = vlaneseq
    %v220 = vshrl.u32 %v219, 7
    %v221 = vsub.s32 0, %v220
    %v222 = vrot.slane %v62, %v221
    %v255 = vunpack.c.l.b16 %v68
    %v256 = vunpack.c.l.b16 %v69
    %v257 = vunpack.c.l.b16 %v70
    %v258 = vunpack.c.l.b16 %v71
    %v259 = vunpack.c.l.b16 %v72
    %v260 = vunpack.c.l.b16 %v73
    %v261 = vunpack.c.l.b16 %v74
    %v262 = vunpack.c.l.b16 %v75
    %v263 = vunpack.c.l.b16 %v76
    %v264 = vunpack.c.l.b16 %v77
    %v265 = vunpack.c.l.b16 %v78
    %v266 = vunpack.c.l.b16 %v79
    %v267 = vunpack.c.l.b16 %v80
    %v268 = vunpack.c.l.b16 %v81
    %v269 = vunpack.c.l.b16 %v82
    %v270 = vunpack.c.l.b16 %v83
    %v271 = vunpack.c.l.b16 %v84
    %v272 = vunpack.c.l.b16 %v85
    %v273 = vunpack.c.l.b16 %v86
    %v274 = vunpack.c.l.b16 %v87
    %v275 = vunpack.c.l.b16 %v88
    %v276 = vunpack.c.l.b16 %v89
    %v277 = vunpack.c.l.b16 %v90
    %v278 = vunpack.c.l.b16 %v91
    %v279 = vunpack.c.l.b16 %v92
    %v280 = vunpack.c.l.b16 %v93
    %v281 = vunpack.c.l.b16 %v94
    %v282 = vunpack.c.l.b16 %v95
    %v283 = vunpack.c.l.b16 %v96
    %v284 = vunpack.c.l.b16 %v97
    %v285 = vunpack.c.l.b16 %v98
    %v286 = vunpack.c.l.b16 %v99
    %v287 = vpack.c.b16 %v256, %v255
    %v288 = vpack.c.b16 %v258, %v257
    %v289 = vpack.c.b16 %v260, %v259
    %v290 = vpack.c.b16 %v262, %v261
    %v291 = vpack.c.b16 %v264, %v263
    %v292 = vpack.c.b16 %v266, %v265
    %v293 = vpack.c.b16 %v268, %v267
    %v294 = vpack.c.b16 %v270, %v269
    %v295 = vpack.c.b16 %v272, %v271
    %v296 = vpack.c.b16 %v274, %v273
    %v297 = vpack.c.b16 %v276, %v275
    %v298 = vpack.c.b16 %v278, %v277
    %v299 = vpack.c.b16 %v280, %v279
    %v300 = vpack.c.b16 %v282, %v281
    %v301 = vpack.c.b16 %v284, %v283
    %v302 = vpack.c.b16 %v286, %v285
    %319 = vmatprep.subr.bf16.mxu0 0
    %320 = vmatpush1.bf16.msra.mxu0 %v287
    %321 = vmatprep.subr.bf16.mxu0 0
    %322 = vmatpush1.bf16.msra.mxu0 %v288
    %323 = vmatprep.subr.bf16.mxu0 0
    %324 = vmatpush1.bf16.msra.mxu0 %v289
    %325 = vmatprep.subr.bf16.mxu0 0
    %326 = vmatpush1.bf16.msra.mxu0 %v290
    %327 = vmatprep.subr.bf16.mxu0 0
    %328 = vmatpush1.bf16.msra.mxu0 %v291
    %329 = vmatprep.subr.bf16.mxu0 0
    %330 = vmatpush1.bf16.msra.mxu0 %v292
    %331 = vmatprep.subr.bf16.mxu0 0
    %332 = vmatpush1.bf16.msra.mxu0 %v293
    %333 = vmatprep.subr.bf16.mxu0 0
    %334 = vmatpush1.bf16.msra.mxu0 %v294
    %335 = vmatprep.subr.bf16.mxu0 0
    %336 = vmatpush1.bf16.msra.mxu0 %v295
    %337 = vmatprep.subr.bf16.mxu0 0
    %338 = vmatpush1.bf16.msra.mxu0 %v296
    %339 = vmatprep.subr.bf16.mxu0 0
    %340 = vmatpush1.bf16.msra.mxu0 %v297
    %341 = vmatprep.subr.bf16.mxu0 0
    %342 = vmatpush1.bf16.msra.mxu0 %v298
    %343 = vmatprep.subr.bf16.mxu0 0
    %344 = vmatpush1.bf16.msra.mxu0 %v299
    %345 = vmatprep.subr.bf16.mxu0 0
    %346 = vmatpush1.bf16.msra.mxu0 %v300
    %347 = vmatprep.subr.bf16.mxu0 0
    %348 = vmatpush1.bf16.msra.mxu0 %v301
    %349 = vmatprep.subr.bf16.mxu0 0
    %350 = vmatpush1.bf16.msra.mxu0 %v302
    %351 = vmatprep.mubr.bf16.mxu0 %v216
    %352 = vmatmul.mubr.bf16.gmra.mrb[0].mxu0 %v215
    %v353 = vpop.f32.mrb[0].mxu0
    %v354 = vadd.f32 %v222, %v353
    %v355 = vpop.f32.mrb[0].mxu0
    %v356 = vpop.f32.mrb[0].mxu0
    %v357 = vadd.f32 %v222, %v356
    %v358 = vpop.f32.mrb[0].mxu0
    %359 = vmatprep.mubr.bf16.mxu0 %v218
    %360 = vmatmul.mubr.bf16.gmra.mrb[0].mxu0 %v217
    %v361 = vpop.f32.mrb[0].mxu0
    %v362 = vadd.f32 %v222, %v361
    %v363 = vpop.f32.mrb[0].mxu0
    %v364 = vpop.f32.mrb[0].mxu0
    %v365 = vadd.f32 %v222, %v364
    %v366 = vpop.f32.mrb[0].mxu0
    %367 = vdwg.mxu0
    %v368 = vadd.f32 %v354, %v357
    %v369 = vadd.f32 %v368, %v362
    %v370 = vadd.f32 %v369, %v365
    %v371 = vrot.slane %v370, 4
    %v372 = vadd.f32 %v370, %v371
    %v373 = vrot.slane %v372, 2
    %v374 = vadd.f32 %v372, %v373
    %v375 = vrot.slane %v374, 1
    %v376 = vadd.f32 %v374, %v375
    %v377 = vrcp.pop 32.0
    %v378 = vmul.f32 %v376, %v377
    %v379 = vsub.f32 %v354, %v378
    %v380 = vsub.f32 %v357, %v378
    %v381 = vsub.f32 %v362, %v378
    %v382 = vsub.f32 %v365, %v378
    %v383 = vmul.f32 %v379, %v379
    %v384 = vmul.f32 %v380, %v380
    %v385 = vmul.f32 %v381, %v381
    %v386 = vmul.f32 %v382, %v382
    %v387 = vadd.f32 %v383, %v384
    %v388 = vadd.f32 %v387, %v385
    %v389 = vadd.f32 %v388, %v386
    %v390 = vrot.slane %v389, 4
    %v391 = vadd.f32 %v389, %v390
    %v392 = vrot.slane %v391, 2
    %v393 = vadd.f32 %v391, %v392
    %v394 = vrot.slane %v393, 1
    %v395 = vadd.f32 %v393, %v394
    %v396 = vmul.f32 %v395, %v377
    %v397 = vadd.f32 %v396, 1e-05
    %v398 = vrsqrt.pop %v397
    %v399 = vmul.f32 %v379, %v398
    %v400 = vmul.f32 %v380, %v398
    %v401 = vmul.f32 %v381, %v398
    %v402 = vmul.f32 %v382, %v398
    %v403 = vlaneseq
    %v404 = vshrl.u32 %v403, 7
    %v405 = vsub.s32 1, %v404
    %v406 = vrot.slane %v62, %v405
    %v407 = vmul.f32 %v399, %v406
    %v408 = vmul.f32 %v400, %v406
    %v409 = vmul.f32 %v401, %v406
    %v410 = vmul.f32 %v402, %v406
    %v411 = vlaneseq
    %v412 = vshrl.u32 %v411, 7
    %v413 = vsub.s32 2, %v412
    %v414 = vrot.slane %v62, %v413
    %v415 = vadd.f32 %v407, %v414
    %v416 = vadd.f32 %v408, %v414
    %v417 = vadd.f32 %v409, %v414
    %v418 = vadd.f32 %v410, %v414
    %v419 = vmax.f32 %v415, 0.0
    %v420 = vmax.f32 %v416, 0.0
    %v421 = vmax.f32 %v417, 0.0
    %v422 = vmax.f32 %v418, 0.0
    %423 = vst [vmem:[#allocation2] sm:$0xff] %v419
    %424 = vst [vmem:[#allocation2 + $0x8] sm:$0xff] %v420
    %425 = vst [vmem:[#allocation2 + $0x10] sm:$0xff] %v421
    %426 = vst [vmem:[#allocation2 + $0x18] sm:$0xff] %v422
    %v427 = vld [vmem:[#allocation2] ss:$2 sm:$0xff]
    %s428 = scalar_lea.vmem [#allocation2], 16
    %v429 = vld [vmem:[%s428] ss:$2 sm:$0xff]
    %s430 = scalar_lea.vmem [#allocation2], 1
    %v431 = vld [vmem:[%s430] ss:$2 sm:$0xff]
    %s432 = scalar_lea.vmem [#allocation2], 17
    %v433 = vld [vmem:[%s432] ss:$2 sm:$0xff]
    %v434 = vmax.f32 %v427, %v431
    %v435 = vmax.f32 %v429, %v433
    %v436 = vld [vmem:[#allocation6] sm:$0xf]
    %v437 = vld [vmem:[#allocation6 + $0x4] sm:$0xf]
    %v438 = vld [vmem:[#allocation6 + $0x8] sm:$0xf]
    %v439 = vld [vmem:[#allocation6 + $0xc] sm:$0xf]
    %v440 = vld [vmem:[#allocation6 + $0x10] sm:$0xf]
    %v441 = vld [vmem:[#allocation6 + $0x14] sm:$0xf]
    %v442 = vld [vmem:[#allocation6 + $0x18] sm:$0xf]
    %v443 = vld [vmem:[#allocation6 + $0x1c] sm:$0xf]
    %v444 = vld [vmem:[#allocation6 + $0x20] sm:$0xf]
    %v445 = vld [vmem:[#allocation6 + $0x24] sm:$0xf]
    %v446 = vld [vmem:[#allocation6 + $0x28] sm:$0xf]
    %v447 = vld [vmem:[#allocation6 + $0x2c] sm:$0xf]
    %v448 = vld [vmem:[#allocation6 + $0x30] sm:$0xf]
    %v449 = vld [vmem:[#allocation6 + $0x34] sm:$0xf]
    %v450 = vld [vmem:[#allocation6 + $0x38] sm:$0xf]
    %v451 = vld [vmem:[#allocation6 + $0x3c] sm:$0xf]
    %v452 = vld [vmem:[#allocation6 + $0x40] sm:$0xf]
    %v453 = vld [vmem:[#allocation6 + $0x44] sm:$0xf]
    %v454 = vld [vmem:[#allocation6 + $0x48] sm:$0xf]
    %v455 = vld [vmem:[#allocation6 + $0x4c] sm:$0xf]
    %v456 = vld [vmem:[#allocation6 + $0x50] sm:$0xf]
    %v457 = vld [vmem:[#allocation6 + $0x54] sm:$0xf]
    %v458 = vld [vmem:[#allocation6 + $0x58] sm:$0xf]
    %v459 = vld [vmem:[#allocation6 + $0x5c] sm:$0xf]
    %v460 = vld [vmem:[#allocation6 + $0x60] sm:$0xf]
    %v461 = vld [vmem:[#allocation6 + $0x64] sm:$0xf]
    %v462 = vld [vmem:[#allocation6 + $0x68] sm:$0xf]
    %v463 = vld [vmem:[#allocation6 + $0x6c] sm:$0xf]
    %v464 = vld [vmem:[#allocation6 + $0x70] sm:$0xf]
    %v465 = vld [vmem:[#allocation6 + $0x74] sm:$0xf]
    %v466 = vld [vmem:[#allocation6 + $0x78] sm:$0xf]
    %v467 = vld [vmem:[#allocation6 + $0x7c] sm:$0xf]
    %vm468 = vcmp.lt.s32.totalorder %v101, 0
    %v469 = vsub.s32 0, %v101
    %v470 = vsel %vm468, %v469, %v101
    %v471 = vshrl.u32 %v470, 3
    %v472 = vand.u32 %v470, 7
    %v473 = vsub.s32 0, %v472
    %v474 = vsel %vm468, %v473, %v472
    %vm475 = vcmp.lt.s32.totalorder %v102, 0
    %v476 = vsub.s32 0, %v102
    %v477 = vsel %vm475, %v476, %v102
    %v478 = vshrl.u32 %v477, 3
    %v479 = vand.u32 %v477, 7
    %v480 = vsub.s32 0, %v479
    %v481 = vsel %vm475, %v480, %v479
    %vm482 = vcmp.ne.s32.totalorder %v474, 0
    %vm483 = vcmp.ne.s32.totalorder %v481, 0
    %vm484 = vcmp.lt.s32.totalorder %v474, 0
    %vm485 = vcmp.lt.s32.totalorder %v481, 0
    %vm486 = vmand %vm484, %vm482
    %vm487 = vmand %vm485, %vm483
    %v488 = vadd.s32 %v474, 8
    %v489 = vadd.s32 %v481, 8
    %v490 = vsel %vm486, %v488, %v474
    %v491 = vsel %vm487, %v489, %v481
    %vm492 = vcmp.ge.s32.totalorder %v490, 1
    %vm493 = vcmp.ge.s32.totalorder %v491, 1
    %v494 = vrot.slane %v434, 7
    %v495 = vrot.slane %v435, 7
    %v496 = vsel %vm161, %v494, %v495
    %v497 = vsel %vm161, %v495, %v494
    %v498 = vsel %vm492, 1, 0
    %v499 = vsel %vm493, 1, 0
    %vm500 = vcmp.eq.s32.totalorder %v498, 1
    %vm501 = vcmp.eq.s32.totalorder %v499, 1
    %v502 = vsel %vm500, %v497, 0.0
    %v503 = vsel %vm501, %v496, 0.0
    %vm504 = vcmp.le.s32.totalorder %v490, 6
    %vm505 = vcmp.le.s32.totalorder %v491, 6
    %v506 = vrot.slane %v434, 1
    %v507 = vrot.slane %v435, 1
    %v508 = vsel %vm186, %v506, %v507
    %v509 = vsel %vm186, %v507, %v506
    %v510 = vsel %vm504, 1, 0
    %v511 = vsel %vm505, 1, 0
    %vm512 = vcmp.eq.s32.totalorder %v510, 1
    %vm513 = vcmp.eq.s32.totalorder %v511, 1
    %v514 = vsel %vm512, %v508, 0.0
    %v515 = vsel %vm513, %v509, 0.0
    %516 = vrot.lane.b32.xlu0 %v434, 64
    %v517 = vpop.permute.xlu0 %516
    %518 = vrot.lane.b32.xlu0 %v435, 64
    %v519 = vpop.permute.xlu0 %518
    %v520 = vadd.f32 %v502, %v517
    %v521 = vadd.f32 %v503, %v519
    %v522 = vpack.c.bf16 %v521, %v520
    %v523 = vpack.c.bf16 %v515, %v514
    %v524 = vlaneseq
    %v525 = vshrl.u32 %v524, 7
    %v526 = vsub.s32 3, %v525
    %v527 = vrot.slane %v62, %v526
    %v560 = vunpack.c.l.b16 %v436
    %v561 = vunpack.c.l.b16 %v437
    %v562 = vunpack.c.l.b16 %v438
    %v563 = vunpack.c.l.b16 %v439
    %v564 = vunpack.c.l.b16 %v440
    %v565 = vunpack.c.l.b16 %v441
    %v566 = vunpack.c.l.b16 %v442
    %v567 = vunpack.c.l.b16 %v443
    %v568 = vunpack.c.l.b16 %v444
    %v569 = vunpack.c.l.b16 %v445
    %v570 = vunpack.c.l.b16 %v446
    %v571 = vunpack.c.l.b16 %v447
    %v572 = vunpack.c.l.b16 %v448
    %v573 = vunpack.c.l.b16 %v449
    %v574 = vunpack.c.l.b16 %v450
    %v575 = vunpack.c.l.b16 %v451
    %v576 = vunpack.c.l.b16 %v452
    %v577 = vunpack.c.l.b16 %v453
    %v578 = vunpack.c.l.b16 %v454
    %v579 = vunpack.c.l.b16 %v455
    %v580 = vunpack.c.l.b16 %v456
    %v581 = vunpack.c.l.b16 %v457
    %v582 = vunpack.c.l.b16 %v458
    %v583 = vunpack.c.l.b16 %v459
    %v584 = vunpack.c.l.b16 %v460
    %v585 = vunpack.c.l.b16 %v461
    %v586 = vunpack.c.l.b16 %v462
    %v587 = vunpack.c.l.b16 %v463
    %v588 = vunpack.c.l.b16 %v464
    %v589 = vunpack.c.l.b16 %v465
    %v590 = vunpack.c.l.b16 %v466
    %v591 = vunpack.c.l.b16 %v467
    %v592 = vpack.c.b16 %v561, %v560
    %v593 = vpack.c.b16 %v563, %v562
    %v594 = vpack.c.b16 %v565, %v564
    %v595 = vpack.c.b16 %v567, %v566
    %v596 = vpack.c.b16 %v569, %v568
    %v597 = vpack.c.b16 %v571, %v570
    %v598 = vpack.c.b16 %v573, %v572
    %v599 = vpack.c.b16 %v575, %v574
    %v600 = vpack.c.b16 %v577, %v576
    %v601 = vpack.c.b16 %v579, %v578
    %v602 = vpack.c.b16 %v581, %v580
    %v603 = vpack.c.b16 %v583, %v582
    %v604 = vpack.c.b16 %v585, %v584
    %v605 = vpack.c.b16 %v587, %v586
    %v606 = vpack.c.b16 %v589, %v588
    %v607 = vpack.c.b16 %v591, %v590
    %624 = vmatprep.subr.bf16.mxu0 0
    %625 = vmatpush1.bf16.msra.mxu0 %v592
    %626 = vmatprep.subr.bf16.mxu0 0
    %627 = vmatpush1.bf16.msra.mxu0 %v593
    %628 = vmatprep.subr.bf16.mxu0 0
    %629 = vmatpush1.bf16.msra.mxu0 %v594
    %630 = vmatprep.subr.bf16.mxu0 0
    %631 = vmatpush1.bf16.msra.mxu0 %v595
    %632 = vmatprep.subr.bf16.mxu0 0
    %633 = vmatpush1.bf16.msra.mxu0 %v596
    %634 = vmatprep.subr.bf16.mxu0 0
    %635 = vmatpush1.bf16.msra.mxu0 %v597
    %636 = vmatprep.subr.bf16.mxu0 0
    %637 = vmatpush1.bf16.msra.mxu0 %v598
    %638 = vmatprep.subr.bf16.mxu0 0
    %639 = vmatpush1.bf16.msra.mxu0 %v599
    %640 = vmatprep.subr.bf16.mxu0 0
    %641 = vmatpush1.bf16.msra.mxu0 %v600
    %642 = vmatprep.subr.bf16.mxu0 0
    %643 = vmatpush1.bf16.msra.mxu0 %v601
    %644 = vmatprep.subr.bf16.mxu0 0
    %645 = vmatpush1.bf16.msra.mxu0 %v602
    %646 = vmatprep.subr.bf16.mxu0 0
    %647 = vmatpush1.bf16.msra.mxu0 %v603
    %648 = vmatprep.subr.bf16.mxu0 0
    %649 = vmatpush1.bf16.msra.mxu0 %v604
    %650 = vmatprep.subr.bf16.mxu0 0
    %651 = vmatpush1.bf16.msra.mxu0 %v605
    %652 = vmatprep.subr.bf16.mxu0 0
    %653 = vmatpush1.bf16.msra.mxu0 %v606
    %654 = vmatprep.subr.bf16.mxu0 0
    %655 = vmatpush1.bf16.msra.mxu0 %v607
    %656 = vmatprep.mubr.bf16.mxu0 %v523
    %657 = vmatmul.mubr.bf16.gmra.mrb[0].mxu0 %v522
    %v658 = vpop.f32.mrb[0].mxu0
    %v659 = vadd.f32 %v527, %v658
    %v660 = vpop.f32.mrb[0].mxu0
    %v661 = vpop.f32.mrb[0].mxu0
    %v662 = vadd.f32 %v527, %v661
    %v663 = vpop.f32.mrb[0].mxu0
    %664 = vdwg.mxu0
    %v665 = vadd.f32 %v659, %v662
    %v666 = vrot.slane %v665, 4
    %v667 = vadd.f32 %v665, %v666
    %v668 = vrot.slane %v667, 2
    %v669 = vadd.f32 %v667, %v668
    %v670 = vrot.slane %v669, 1
    %v671 = vadd.f32 %v669, %v670
    %v672 = vrcp.pop 16.0
    %v673 = vmul.f32 %v671, %v672
    %v674 = vsub.f32 %v659, %v673
    %v675 = vsub.f32 %v662, %v673
    %v676 = vmul.f32 %v674, %v674
    %v677 = vmul.f32 %v675, %v675
    %v678 = vadd.f32 %v676, %v677
    %v679 = vrot.slane %v678, 4
    %v680 = vadd.f32 %v678, %v679
    %v681 = vrot.slane %v680, 2
    %v682 = vadd.f32 %v680, %v681
    %v683 = vrot.slane %v682, 1
    %v684 = vadd.f32 %v682, %v683
    %v685 = vmul.f32 %v684, %v672
    %v686 = vadd.f32 %v685, 1e-05
    %v687 = vrsqrt.pop %v686
    %v688 = vmul.f32 %v674, %v687
    %v689 = vmul.f32 %v675, %v687
    %v690 = vlaneseq
    %v691 = vshrl.u32 %v690, 7
    %v692 = vsub.s32 4, %v691
    %v693 = vrot.slane %v62, %v692
    %v694 = vmul.f32 %v688, %v693
    %v695 = vmul.f32 %v689, %v693
    %v696 = vlaneseq
    %v697 = vshrl.u32 %v696, 7
    %v698 = vsub.s32 5, %v697
    %v699 = vrot.slane %v62, %v698
    %v700 = vadd.f32 %v694, %v699
    %v701 = vadd.f32 %v695, %v699
    %v702 = vmax.f32 %v700, 0.0
    %v703 = vmax.f32 %v701, 0.0
    %704 = vst [vmem:[#allocation3] sm:$0xff] %v702
    %705 = vst [vmem:[#allocation3 + $0x8] sm:$0xff] %v703
    %v706 = vld [vmem:[#allocation3] ss:$2 sm:$0xff]
    %s707 = scalar_lea.vmem [#allocation3], 1
    %v708 = vld [vmem:[%s707] ss:$2 sm:$0xff]
    %v709 = vmax.f32 %v706, %v708
    %v710 = vld [vmem:[#allocation8] sm:$0xf]
    %v711 = vld [vmem:[#allocation8 + $0x4] sm:$0xf]
    %v712 = vld [vmem:[#allocation8 + $0x8] sm:$0xf]
    %v713 = vld [vmem:[#allocation8 + $0xc] sm:$0xf]
    %v714 = vld [vmem:[#allocation8 + $0x10] sm:$0xf]
    %v715 = vld [vmem:[#allocation8 + $0x14] sm:$0xf]
    %v716 = vld [vmem:[#allocation8 + $0x18] sm:$0xf]
    %v717 = vld [vmem:[#allocation8 + $0x1c] sm:$0xf]
    %v718 = vld [vmem:[#allocation8 + $0x20] sm:$0xf]
    %v719 = vld [vmem:[#allocation8 + $0x24] sm:$0xf]
    %v720 = vld [vmem:[#allocation8 + $0x28] sm:$0xf]
    %v721 = vld [vmem:[#allocation8 + $0x2c] sm:$0xf]
    %v722 = vld [vmem:[#allocation8 + $0x30] sm:$0xf]
    %v723 = vld [vmem:[#allocation8 + $0x34] sm:$0xf]
    %v724 = vld [vmem:[#allocation8 + $0x38] sm:$0xf]
    %v725 = vld [vmem:[#allocation8 + $0x3c] sm:$0xf]
    %v726 = vld [vmem:[#allocation8 + $0x40] sm:$0xf]
    %v727 = vld [vmem:[#allocation8 + $0x44] sm:$0xf]
    %v728 = vld [vmem:[#allocation8 + $0x48] sm:$0xf]
    %v729 = vld [vmem:[#allocation8 + $0x4c] sm:$0xf]
    %v730 = vld [vmem:[#allocation8 + $0x50] sm:$0xf]
    %v731 = vld [vmem:[#allocation8 + $0x54] sm:$0xf]
    %v732 = vld [vmem:[#allocation8 + $0x58] sm:$0xf]
    %v733 = vld [vmem:[#allocation8 + $0x5c] sm:$0xf]
    %v734 = vld [vmem:[#allocation8 + $0x60] sm:$0xf]
    %v735 = vld [vmem:[#allocation8 + $0x64] sm:$0xf]
    %v736 = vld [vmem:[#allocation8 + $0x68] sm:$0xf]
    %v737 = vld [vmem:[#allocation8 + $0x6c] sm:$0xf]
    %v738 = vld [vmem:[#allocation8 + $0x70] sm:$0xf]
    %v739 = vld [vmem:[#allocation8 + $0x74] sm:$0xf]
    %v740 = vld [vmem:[#allocation8 + $0x78] sm:$0xf]
    %v741 = vld [vmem:[#allocation8 + $0x7c] sm:$0xf]
    %v742 = vld [vmem:[#allocation8 + $0x80] sm:$0xf]
    %v743 = vld [vmem:[#allocation8 + $0x84] sm:$0xf]
    %v744 = vld [vmem:[#allocation8 + $0x88] sm:$0xf]
    %v745 = vld [vmem:[#allocation8 + $0x8c] sm:$0xf]
    %v746 = vld [vmem:[#allocation8 + $0x90] sm:$0xf]
    %v747 = vld [vmem:[#allocation8 + $0x94] sm:$0xf]
    %v748 = vld [vmem:[#allocation8 + $0x98] sm:$0xf]
    %v749 = vld [vmem:[#allocation8 + $0x9c] sm:$0xf]
    %v750 = vld [vmem:[#allocation8 + $0xa0] sm:$0xf]
    %v751 = vld [vmem:[#allocation8 + $0xa4] sm:$0xf]
    %v752 = vld [vmem:[#allocation8 + $0xa8] sm:$0xf]
    %v753 = vld [vmem:[#allocation8 + $0xac] sm:$0xf]
    %v754 = vld [vmem:[#allocation8 + $0xb0] sm:$0xf]
    %v755 = vld [vmem:[#allocation8 + $0xb4] sm:$0xf]
    %v756 = vld [vmem:[#allocation8 + $0xb8] sm:$0xf]
    %v757 = vld [vmem:[#allocation8 + $0xbc] sm:$0xf]
    %vm758 = vcmp.lt.s32.totalorder %v101, 0
    %v759 = vsub.s32 0, %v101
    %v760 = vsel %vm758, %v759, %v101
    %v761 = vshrl.u32 %v760, 2
    %v762 = vand.u32 %v760, 3
    %v763 = vsub.s32 0, %v762
    %v764 = vsel %vm758, %v763, %v762
    %vm765 = vcmp.ne.s32.totalorder %v764, 0
    %vm766 = vcmp.lt.s32.totalorder %v764, 0
    %vm767 = vmand %vm766, %vm765
    %v768 = vadd.s32 %v764, 4
    %v769 = vsel %vm767, %v768, %v764
    %vm770 = vcmp.ge.s32.totalorder %v769, 1
    %v771 = vrot.slane %v709, 7
    %v772 = vsel %vm770, 1, 0
    %vm773 = vcmp.eq.s32.totalorder %v772, 1
    %v774 = vsel %vm773, %v771, 0.0
    %vm775 = vcmp.le.s32.totalorder %v769, 2
    %v776 = vrot.slane %v709, 1
    %v777 = vsel %vm775, 1, 0
    %vm778 = vcmp.eq.s32.totalorder %v777, 1
    %v779 = vsel %vm778, %v776, 0.0
    %v780 = vpack.c.bf16 %v774, %v774
    %v781 = vpack.c.bf16 %v709, %v709
    %v782 = vpack.c.bf16 %v779, %v779
    %v783 = vlaneseq
    %v784 = vshrl.u32 %v783, 7
    %v785 = vsub.s32 6, %v784
    %v786 = vrot.slane %v62, %v785
    %v835 = vunpack.c.l.b16 %v710
    %v836 = vunpack.c.l.b16 %v711
    %v837 = vunpack.c.l.b16 %v712
    %v838 = vunpack.c.l.b16 %v713
    %v839 = vunpack.c.l.b16 %v714
    %v840 = vunpack.c.l.b16 %v715
    %v841 = vunpack.c.l.b16 %v716
    %v842 = vunpack.c.l.b16 %v717
    %v843 = vunpack.c.l.b16 %v718
    %v844 = vunpack.c.l.b16 %v719
    %v845 = vunpack.c.l.b16 %v720
    %v846 = vunpack.c.l.b16 %v721
    %v847 = vunpack.c.l.b16 %v722
    %v848 = vunpack.c.l.b16 %v723
    %v849 = vunpack.c.l.b16 %v724
    %v850 = vunpack.c.l.b16 %v725
    %v851 = vunpack.c.l.b16 %v726
    %v852 = vunpack.c.l.b16 %v727
    %v853 = vunpack.c.l.b16 %v728
    %v854 = vunpack.c.l.b16 %v729
    %v855 = vunpack.c.l.b16 %v730
    %v856 = vunpack.c.l.b16 %v731
    %v857 = vunpack.c.l.b16 %v732
    %v858 = vunpack.c.l.b16 %v733
    %v859 = vunpack.c.l.b16 %v734
    %v860 = vunpack.c.l.b16 %v735
    %v861 = vunpack.c.l.b16 %v736
    %v862 = vunpack.c.l.b16 %v737
    %v863 = vunpack.c.l.b16 %v738
    %v864 = vunpack.c.l.b16 %v739
    %v865 = vunpack.c.l.b16 %v740
    %v866 = vunpack.c.l.b16 %v741
    %v867 = vunpack.c.l.b16 %v742
    %v868 = vunpack.c.l.b16 %v743
    %v869 = vunpack.c.l.b16 %v744
    %v870 = vunpack.c.l.b16 %v745
    %v871 = vunpack.c.l.b16 %v746
    %v872 = vunpack.c.l.b16 %v747
    %v873 = vunpack.c.l.b16 %v748
    %v874 = vunpack.c.l.b16 %v749
    %v875 = vunpack.c.l.b16 %v750
    %v876 = vunpack.c.l.b16 %v751
    %v877 = vunpack.c.l.b16 %v752
    %v878 = vunpack.c.l.b16 %v753
    %v879 = vunpack.c.l.b16 %v754
    %v880 = vunpack.c.l.b16 %v755
    %v881 = vunpack.c.l.b16 %v756
    %v882 = vunpack.c.l.b16 %v757
    %v883 = vpack.c.b16 %v836, %v835
    %v884 = vpack.c.b16 %v838, %v837
    %v885 = vpack.c.b16 %v840, %v839
    %v886 = vpack.c.b16 %v842, %v841
    %v887 = vpack.c.b16 %v844, %v843
    %v888 = vpack.c.b16 %v846, %v845
    %v889 = vpack.c.b16 %v848, %v847
    %v890 = vpack.c.b16 %v850, %v849
    %v891 = vpack.c.b16 %v852, %v851
    %v892 = vpack.c.b16 %v854, %v853
    %v893 = vpack.c.b16 %v856, %v855
    %v894 = vpack.c.b16 %v858, %v857
    %v895 = vpack.c.b16 %v860, %v859
    %v896 = vpack.c.b16 %v862, %v861
    %v897 = vpack.c.b16 %v864, %v863
    %v898 = vpack.c.b16 %v866, %v865
    %v899 = vpack.c.b16 %v868, %v867
    %v900 = vpack.c.b16 %v870, %v869
    %v901 = vpack.c.b16 %v872, %v871
    %v902 = vpack.c.b16 %v874, %v873
    %v903 = vpack.c.b16 %v876, %v875
    %v904 = vpack.c.b16 %v878, %v877
    %v905 = vpack.c.b16 %v880, %v879
    %v906 = vpack.c.b16 %v882, %v881
    %931 = vmatprep.subr.bf16.mxu0 0
    %932 = vmatpush1.bf16.msra.mxu0 %v883
    %933 = vmatprep.subr.bf16.mxu0 0
    %934 = vmatpush1.bf16.msra.mxu0 %v884
    %935 = vmatprep.subr.bf16.mxu0 0
    %936 = vmatpush1.bf16.msra.mxu0 %v885
    %937 = vmatprep.subr.bf16.mxu0 0
    %938 = vmatpush1.bf16.msra.mxu0 %v886
    %939 = vmatprep.subr.bf16.mxu0 0
    %940 = vmatpush1.bf16.msra.mxu0 %v887
    %941 = vmatprep.subr.bf16.mxu0 0
    %942 = vmatpush1.bf16.msra.mxu0 %v888
    %943 = vmatprep.subr.bf16.mxu0 0
    %944 = vmatpush1.bf16.msra.mxu0 %v889
    %945 = vmatprep.subr.bf16.mxu0 0
    %946 = vmatpush1.bf16.msra.mxu0 %v890
    %947 = vmatprep.subr.bf16.mxu0 0
    %948 = vmatpush1.bf16.msra.mxu0 %v891
    %949 = vmatprep.subr.bf16.mxu0 0
    %950 = vmatpush1.bf16.msra.mxu0 %v892
    %951 = vmatprep.subr.bf16.mxu0 0
    %952 = vmatpush1.bf16.msra.mxu0 %v893
    %953 = vmatprep.subr.bf16.mxu0 0
    %954 = vmatpush1.bf16.msra.mxu0 %v894
    %955 = vmatprep.subr.bf16.mxu0 0
    %956 = vmatpush1.bf16.msra.mxu0 %v895
    %957 = vmatprep.subr.bf16.mxu0 0
    %958 = vmatpush1.bf16.msra.mxu0 %v896
    %959 = vmatprep.subr.bf16.mxu0 0
    %960 = vmatpush1.bf16.msra.mxu0 %v897
    %961 = vmatprep.subr.bf16.mxu0 0
    %962 = vmatpush1.bf16.msra.mxu0 %v898
    %963 = vmatprep.mubr.bf16.mxu0 %v781
    %964 = vmatmul.mubr.bf16.gmra.mrb[0].mxu0 %v780
    %v965 = vpop.f32.mrb[0].mxu0
    %v966 = vadd.f32 %v786, %v965
    %v967 = vpop.f32.mrb[0].mxu0
    %v968 = vpop.f32.mrb[0].mxu0
    %v969 = vpop.f32.mrb[0].mxu0
    %970 = vdwg.mxu0
    %971 = vmatprep.subr.bf16.mxu0 0
    %972 = vmatpush1.bf16.msra.mxu0 %v899
    %973 = vmatprep.subr.bf16.mxu0 0
    %974 = vmatpush1.bf16.msra.mxu0 %v900
    %975 = vmatprep.subr.bf16.mxu0 0
    %976 = vmatpush1.bf16.msra.mxu0 %v901
    %977 = vmatprep.subr.bf16.mxu0 0
    %978 = vmatpush1.bf16.msra.mxu0 %v902
    %979 = vmatprep.subr.bf16.mxu0 0
    %980 = vmatpush1.bf16.msra.mxu0 %v903
    %981 = vmatprep.subr.bf16.mxu0 0
    %982 = vmatpush1.bf16.msra.mxu0 %v904
    %983 = vmatprep.subr.bf16.mxu0 0
    %984 = vmatpush1.bf16.msra.mxu0 %v905
    %985 = vmatprep.subr.bf16.mxu0 0
    %986 = vmatpush1.bf16.msra.mxu0 %v906
    %987 = vmatprep.subr.bf16.mxu0 0
    %988 = vmatpush1.bf16.msra.mxu0 0
    %989 = vmatprep.subr.bf16.mxu0 0
    %990 = vmatpush1.bf16.msra.mxu0 0
    %991 = vmatprep.subr.bf16.mxu0 0
    %992 = vmatpush1.bf16.msra.mxu0 0
    %993 = vmatprep.subr.bf16.mxu0 0
    %994 = vmatpush1.bf16.msra.mxu0 0
    %995 = vmatprep.subr.bf16.mxu0 0
    %996 = vmatpush1.bf16.msra.mxu0 0
    %997 = vmatprep.subr.bf16.mxu0 0
    %998 = vmatpush1.bf16.msra.mxu0 0
    %999 = vmatprep.subr.bf16.mxu0 0
    %1000 = vmatpush1.bf16.msra.mxu0 0
    %1001 = vmatprep.subr.bf16.mxu0 0
    %1002 = vmatpush1.bf16.msra.mxu0 0
    %1003 = vmatprep.mubr.bf16.mxu0 0
    %1004 = vmatmul.mubr.bf16.gmra.mrb[0].mxu0 %v782
    %v1005 = vpop.f32.mrb[0].mxu0
    %v1006 = vadd.f32 %v966, %v1005
    %v1007 = vpop.f32.mrb[0].mxu0
    %v1008 = vpop.f32.mrb[0].mxu0
    %v1009 = vpop.f32.mrb[0].mxu0
    %1010 = vdwg.mxu0
    %v1011 = vrot.slane %v1006, 4
    %v1012 = vadd.f32 %v1006, %v1011
    %v1013 = vrot.slane %v1012, 2
    %v1014 = vadd.f32 %v1012, %v1013
    %v1015 = vrot.slane %v1014, 1
    %v1016 = vadd.f32 %v1014, %v1015
    %v1017 = vrcp.pop 8.0
    %v1018 = vmul.f32 %v1016, %v1017
    %v1019 = vsub.f32 %v1006, %v1018
    %v1020 = vmul.f32 %v1019, %v1019
    %v1021 = vrot.slane %v1020, 4
    %v1022 = vadd.f32 %v1020, %v1021
    %v1023 = vrot.slane %v1022, 2
    %v1024 = vadd.f32 %v1022, %v1023
    %v1025 = vrot.slane %v1024, 1
    %v1026 = vadd.f32 %v1024, %v1025
    %v1027 = vmul.f32 %v1026, %v1017
    %v1028 = vadd.f32 %v1027, 1e-05
    %v1029 = vrsqrt.pop %v1028
    %v1030 = vmul.f32 %v1019, %v1029
    %v1031 = vlaneseq
    %v1032 = vshrl.u32 %v1031, 7
    %v1033 = vsub.s32 7, %v1032
    %v1034 = vrot.slane %v62, %v1033
    %v1035 = vmul.f32 %v1030, %v1034
    %v1036 = vlaneseq
    %v1037 = vshrl.u32 %v1036, 7
    %v1038 = vsub.s32 0, %v1037
    %v1039 = vrot.slane %v63, %v1038
    %v1040 = vadd.f32 %v1035, %v1039
    %v1041 = vmax.f32 %v1040, 0.0
    %1042 = vst [vmem:[%s5] sm:$0xff] %v1041
    // Predicated region
    $region34: #{load_disc_forward.1} parent=1 // pred_check
      _
    $region35: #{load_disc_forward.1} parent=1 // pred_check_branch
      %1044 = sbr.rel (0) target = $region37
    $region36: #{load_disc_forward.1} parent=1 // pred_region
      _
    $region37: #{load_disc_forward.1} parent=1 // pred_fallthru
      _
    // Predicated region
    $region38: #{load_disc_forward.1} parent=1 // pred_check
      _
    $region39: #{load_disc_forward.1} parent=1 // pred_check_branch
      %1046 = sbr.rel (0) target = $region41
    $region40: #{load_disc_forward.1} parent=1 // pred_region
      _
    $region41: #{load_disc_forward.1} parent=1 // pred_fallthru
      _
    %1047 = vsyncpa [#allocation5], 1
    %1048 = vsyncpa [#allocation7], 1

</llo_original>
